<compile_context>
chip_gen: v6e
topology: v6e:2x2x1
jax: 0.10.0
libtpu: 0.0.40
codegen_flags: <defaults>
</compile_context>

<pallas_src>
import math

import jax
import jax.numpy as jnp
from jax import lax
from jax.experimental import pallas as pl
from jax.experimental.pallas import tpu as pltpu


def _round_up(x, m):
    return (x + m - 1) // m * m


def _scorer_kernel(q_ref, t_ref, w_ref, b_ref, out_ref):
    # q_ref/t_ref : (TB, S) VMEM tiles (caller dtype)
    # w_ref       : (2, S)  VMEM   row 0 = Wq, row 1 = sqrt(S) * Wp
    # b_ref       : (1, 1)  SMEM   fused scalar bias (bq + bp)
    # out_ref     : (1, TB) VMEM   lane-dense output row (batch on lane axis)
    q = q_ref[...].astype(jnp.float32)
    t = t_ref[...].astype(jnp.float32)
    w = w_ref[...].astype(jnp.float32)
    wq = w[0:1, :]        # (1, S)
    wps = w[1:2, :]       # (1, S), already scaled by sqrt(S)

    # fused[j,k] = q[j,k] * (Wq[k] + sqrt(S)*Wp[k] * t[j,k])
    # out[j]     = sum_k fused[j,k]   (+ fused bias)
    fused = q * (wq + wps * t)                       # 3 VPU ops over (TB, S)

    ones = jnp.ones((1, q.shape[1]), jnp.float32)
    # Contract the minor (feature) dim of both operands: (1,S) . (TB,S)^T
    # -> (1, TB).  MXU-native (same as q @ k.T in attention), lane-dense out.
    dn = (((1,), (1,)), ((), ()))
    out_row = lax.dot_general(ones, fused, dn,
                              preferred_element_type=jnp.float32)

    out_ref[...] = out_row + b_ref[0, 0]


def scorer_linear(query, target, wq, bq, wp, bp, *, tb=None,
                  input_vmem_budget=32 * 1024 * 1024):
    """query, target: [B, S].  Returns [B] float32."""
    B, S = query.shape
    assert target.shape == (B, S)
    scale = float(math.sqrt(S))  # np.sqrt(query.shape[1]) in the PyTorch code

    # Trace-time (tiny) preprocessing: fold sqrt(S) into Wp, merge the two
    # weight rows into one (2, S) array, fuse both biases into one scalar.
    w2 = jnp.concatenate(
        [jnp.asarray(wq, jnp.float32).reshape(1, S),
         jnp.asarray(wp, jnp.float32).reshape(1, S) * scale], axis=0)   # (2,S)
    b = (jnp.asarray(bq, jnp.float32).reshape(()) +
         jnp.asarray(bp, jnp.float32).reshape(())).reshape(1, 1)

    itemsz = query.dtype.itemsize
    lane_s = _round_up(S, 128)                    # lane-padded row width

    # Default tile: large for small feature sizes (memory-bound regime).
    if tb is None:
        tb = 8192 if S <= 256 else 2048

    # VMEM budget with the real lane-padded footprint:
    #   2 inputs x 2 pipeline buffers x (tb x lane_s x itemsize)
    budget_rows = max(128, (input_vmem_budget // (4 * itemsz * lane_s))
                      // 128 * 128)
    tb_cap = max(128, min(_round_up(tb, 128), budget_rows))

    if B <= 128:
        # Single full-array block (block dims == array dims satisfies the
        # (8,128) rule for any small B).
        tb_eff = B
    else:
        # Multiple of 128 (lane-dense output block), capped by the VMEM
        # budget, and aiming for >= 2 grid steps so the 'parallel' grid axis
        # can use both TensorCores on v7x.
        tb_eff = max(128, min(tb_cap, _round_up(pl.cdiv(B, 2), 128)))
    grid = (pl.cdiv(B, tb_eff),)

    # Explicit VMEM limit from the actual footprint (+ margin); raises v5e's
    # scoped default when needed, stays well under v7x's 64 MiB VMEM.
    in_bytes = 2 * 2 * tb_eff * lane_s * itemsz          # inputs, double-buf
    out_bytes = 2 * 8 * max(tb_eff, 128) * 4             # (1,tb) -> 8 sublanes
    w_bytes = 2 * 8 * lane_s * 4
    vmem_limit = int(1.25 * (in_bytes + out_bytes + w_bytes)) + (2 << 20)
    vmem_limit = min(max(vmem_limit, 16 << 20), 48 << 20)

    cost = pl.CostEstimate(
        flops=5 * B * S,                                   # elementwise + dot
        transcendentals=0,
        bytes_accessed=int(2 * B * S * itemsz + B * 4 + 2 * S * 4 + 4))

    out = pl.pallas_call(
        _scorer_kernel,
        out_shape=jax.ShapeDtypeStruct((1, B), jnp.float32),
        grid=grid,
        in_specs=[
            pl.BlockSpec((tb_eff, S), lambda i: (i, 0)),          # query tile
            pl.BlockSpec((tb_eff, S), lambda i: (i, 0)),          # target tile
            pl.BlockSpec((2, S), lambda i: (0, 0)),               # [Wq; sqrt(S)Wp]
            pl.BlockSpec(memory_space=pltpu.MemorySpace.SMEM),    # fused bias
        ],
        # Lane-dense output: batch lives on the lane axis; ragged last block
        # is masked by Pallas on store (out lanes >= B never exist in HBM).
        out_specs=pl.BlockSpec((1, tb_eff), lambda i: (0, i)),
        compiler_params=pltpu.CompilerParams(
            dimension_semantics=("parallel",),
            vmem_limit_bytes=vmem_limit),
        cost_estimate=cost,
    )(query, target, w2, b)

    return out[0]  # .squeeze(1) equivalent -> shape [B]


def scorer_ref(query, target, wq, bq, wp, bp):
    scale = math.sqrt(query.shape[1])
    s1 = query @ wq[0] + bq[0, 0]
    s2 = (query * target * scale) @ wp[0] + bp[0, 0]
    return s1 + s2


if __name__ == "__main__":
    S = 32  # feature size

    key = jax.random.PRNGKey(0)
    k_q, k_t, k_wq, k_bq, k_wp, k_bp = jax.random.split(key, 6)

    bound = 1.0 / math.sqrt(S)
    wq = jax.random.uniform(k_wq, (1, S), jnp.float32, -bound, bound)
    bq = jax.random.uniform(k_bq, (1, 1), jnp.float32, -bound, bound)
    wp = jax.random.uniform(k_wp, (1, S), jnp.float32, -bound, bound)
    bp = jax.random.uniform(k_bp, (1, 1), jnp.float32, -bound, bound)

    # Test 1: small batch -> single full-array block path.
    B1 = 8
    q1 = jax.random.normal(k_q, (B1, S), dtype=jnp.float32)
    t1 = jax.random.normal(k_t, (B1, S), dtype=jnp.float32)
    out1 = jax.block_until_ready(scorer_linear(q1, t1, wq, bq, wp, bp))
    ref1 = scorer_ref(q1, t1, wq, bq, wp, bp)
    assert out1.shape == (B1,)
    assert jnp.allclose(out1, ref1, atol=1e-4, rtol=1e-4), (out1, ref1)

    # Test 2: ragged batch, multi-step parallel grid, no input padding.
    B2 = 200
    q2 = jax.random.normal(jax.random.fold_in(k_q, 1), (B2, S), jnp.float32)
    t2 = jax.random.normal(jax.random.fold_in(k_t, 1), (B2, S), jnp.float32)
    out2 = jax.block_until_ready(scorer_linear(q2, t2, wq, bq, wp, bp))
    ref2 = scorer_ref(q2, t2, wq, bq, wp, bp)
    assert out2.shape == (B2,)
    assert jnp.allclose(out2, ref2, atol=1e-4, rtol=1e-4), (out2, ref2)

    # Test 3: larger ragged batch with a user-capped tile (>2 grid steps,
    # ragged last block of 13 rows).
    B3 = 1037
    q3 = jax.random.normal(jax.random.fold_in(k_q, 2), (B3, S), jnp.float32)
    t3 = jax.random.normal(jax.random.fold_in(k_t, 2), (B3, S), jnp.float32)
    out3 = jax.block_until_ready(scorer_linear(q3, t3, wq, bq, wp, bp, tb=256))
    ref3 = scorer_ref(q3, t3, wq, bq, wp, bp)
    assert out3.shape == (B3,)
    assert jnp.allclose(out3, ref3, atol=1e-4, rtol=1e-4), (out3, ref3)

    print("KERNEL_OK")
</pallas_src>

<mosaic_0001>
module attributes {stable_mosaic.version = 11 : i64} {
  func.func @_scorer_kernel(%arg0: i32, %arg1: memref<8x32xf32, #tpu.memory_space<vmem>>, %arg2: memref<8x32xf32, #tpu.memory_space<vmem>>, %arg3: memref<2x32xf32, #tpu.memory_space<vmem>>, %arg4: memref<1x1xf32, #tpu.memory_space<smem>>, %arg5: memref<1x8xf32, #tpu.memory_space<vmem>>) attributes {dimension_semantics = [#tpu.dimension_semantics<parallel>], iteration_bounds = array<i64: 1>, scalar_prefetch = 0 : i64, scratch_operands = 0 : i64, tpu.core_type = #tpu.core_type<tc>, window_params = [{transform_indices = @transform_0, window_bounds = array<i64: 8, 32>}, {transform_indices = @transform_1, window_bounds = array<i64: 8, 32>}, {pipeline_mode = #tpu.pipeline_mode<synchronous>, transform_indices = @transform_2, window_bounds = array<i64: 2, 32>}, {transform_indices = @transform_3, window_bounds = array<i64: 1, 1>}, {transform_indices = @transform_4, window_bounds = array<i64: 1, 8>}]} {
    %c0 = arith.constant 0 : index
    %c0_0 = arith.constant 0 : index
    %0 = vector.load %arg1[%c0, %c0_0] : memref<8x32xf32, #tpu.memory_space<vmem>>, vector<8x32xf32>
    %c0_1 = arith.constant 0 : index
    %c0_2 = arith.constant 0 : index
    %1 = vector.load %arg2[%c0_1, %c0_2] : memref<8x32xf32, #tpu.memory_space<vmem>>, vector<8x32xf32>
    %c0_3 = arith.constant 0 : index
    %c0_4 = arith.constant 0 : index
    %2 = vector.load %arg3[%c0_3, %c0_4] : memref<2x32xf32, #tpu.memory_space<vmem>>, vector<2x32xf32>
    %3 = vector.extract_strided_slice %2 {offsets = [0, 0], sizes = [1, 32], strides = [1, 1]} : vector<2x32xf32> to vector<1x32xf32>
    %4 = vector.extract_strided_slice %2 {offsets = [1, 0], sizes = [1, 32], strides = [1, 1]} : vector<2x32xf32> to vector<1x32xf32>
    %5 = vector.broadcast %4 : vector<1x32xf32> to vector<8x32xf32>
    %6 = arith.mulf %5, %1 : vector<8x32xf32>
    %7 = vector.broadcast %3 : vector<1x32xf32> to vector<8x32xf32>
    %8 = arith.addf %7, %6 : vector<8x32xf32>
    %9 = arith.mulf %0, %8 : vector<8x32xf32>
    %cst = arith.constant 1.000000e+00 : f32
    %10 = vector.broadcast %cst : f32 to vector<1x32xf32>
    %cst_5 = arith.constant dense<0.000000e+00> : vector<1x8xf32>
    %11 = tpu.matmul %10, %9, %cst_5 {dimension_numbers = #tpu.dot_dimension_numbers<[1], [1], [0], [0], [0, 0, 1, 0], [], []>} : vector<1x32xf32>, vector<8x32xf32>, vector<1x8xf32> -> vector<1x8xf32>
    %c0_6 = arith.constant 0 : index
    %c0_7 = arith.constant 0 : index
    %12 = memref.load %arg4[%c0_6, %c0_7] : memref<1x1xf32, #tpu.memory_space<smem>>
    %13 = vector.broadcast %12 : f32 to vector<1x8xf32>
    %14 = arith.addf %11, %13 : vector<1x8xf32>
    %c0_8 = arith.constant 0 : index
    %c0_9 = arith.constant 0 : index
    %15 = vector.load %arg5[%c0_8, %c0_9] : memref<1x8xf32, #tpu.memory_space<vmem>>, vector<1x8xf32>
    tpu.vector_store %arg5[%c0_8, %c0_9], %14 {strides = array<i32>} : memref<1x8xf32, #tpu.memory_space<vmem>>, vector<1x8xf32>,
    return
  }
  func.func @transform_0(%arg0: i32) -> (i32, i32) {
    %c0_i32 = arith.constant 0 : i32
    %c0_i32_0 = arith.constant 0 : i32
    return %arg0, %c0_i32 : i32, i32
  }
  func.func @transform_1(%arg0: i32) -> (i32, i32) {
    %c0_i32 = arith.constant 0 : i32
    %c0_i32_0 = arith.constant 0 : i32
    return %arg0, %c0_i32 : i32, i32
  }
  func.func @transform_2(%arg0: i32) -> (i32, i32) {
    %c0_i32 = arith.constant 0 : i32
    %c0_i32_0 = arith.constant 0 : i32
    %c0_i32_1 = arith.constant 0 : i32
    return %c0_i32, %c0_i32_0 : i32, i32
  }
  func.func @transform_3(%arg0: i32) -> (i32, i32) {
    %c0_i32 = arith.constant 0 : i32
    %c0_i32_0 = arith.constant 0 : i32
    %c0_i32_1 = arith.constant 0 : i32
    return %c0_i32, %c0_i32_0 : i32, i32
  }
  func.func @transform_4(%arg0: i32) -> (i32, i32) {
    %c0_i32 = arith.constant 0 : i32
    %c0_i32_0 = arith.constant 0 : i32
    return %c0_i32, %arg0 : i32, i32
  }
}

</mosaic_0001>

<llo_original>
// kernel: tpu_custom_call.1
$region0: #{tpu_custom_call.1}
  #allocation0 [shape = 'u32[]', space=smem, size = 0x4, offset = 0x4, fixed_abs, tag = 'smem constant byte address 0x4 - core index']
  #allocation1 [shape = 'u32[144,128]{1,0:T(1,128)}', space=vmem, size = 0x12000, scoped, tag = 'internal scratch']
  #allocation2 [shape = 'f32[1,1]{1,0:T(1,128)S(6)}', space=smem, size = 0x200, scoped, tag = 'scoped memory for tpu_custom_call.1']
  %s0 = inlined_call_operand.hbm [shape: f32[8,32], index: 0, kind: input, shape index: {}]
  %s1 = inlined_call_operand.hbm [shape: f32[8,32], index: 1, kind: input, shape index: {}]
  %s2 = inlined_call_operand.vmem [shape: f32[2,32], index: 2, kind: input, shape index: {}]
  %s3 = inlined_call_operand.<no memory space> [shape: f32[1,1], index: 3, kind: input, shape index: {}]
  %s4 = inlined_call_operand.hbm [shape: f32[1,8], index: 4, kind: output, shape index: {}]
  %s5 = sld [smem:[#allocation0]]
  $region34: #{tpu_custom_call.1} parent=0
    _
  %s7 = ssub.s32 1, %s5
  %s8 = scalar_select 0, %s7, %s5
  %9 = sst [smem:[#allocation2]] %s3
  $region1: #{tpu_custom_call.1} parent=0
    #allocation3 [shape = 'u8[4096]{0}', space=vmem, size = 0x1000, scoped, tag = 'input window, operand 0, single buffered']
    #allocation4 [shape = 's32[1]{0}', space=sflag, size = 0x4, scoped, tag = 'scoped memory for tpu_custom_call.1']
    #allocation5 [shape = 's32[1]{0}', space=sflag, size = 0x4, scoped, tag = 'scoped memory for tpu_custom_call.1']
    #allocation6 [shape = 'u8[4096]{0}', space=vmem, size = 0x1000, scoped, tag = 'input window, operand 1, single buffered']
    #allocation7 [shape = 's32[1]{0}', space=sflag, size = 0x4, scoped, tag = 'scoped memory for tpu_custom_call.1']
    #allocation8 [shape = 'u8[512]{0}', space=vmem, size = 0x400, scoped, tag = 'output window, operand 0, single buffered']
    %10 = vsyncpa [#allocation4], 0
    %11 = vsyncpa [#allocation7], 0
    %12 = vsyncpa [#allocation5], 0
    // Predicated region
    $region2: #{tpu_custom_call.1} parent=1 // pred_check
      _
    $region3: #{tpu_custom_call.1} parent=1 // pred_check_branch
      %14 = sbr.rel (0) target = $region5
    $region4: #{tpu_custom_call.1} parent=1 // pred_region
      %s16 = ssub.s32 128, 128
      %17 = vsyncadd [#allocation4], %s16
      %s19 = sshll.u32 [#allocation3], 4
      %s20 = int_to_ptr.vmem [resolvable:$true] %s19
      %22 = dma.hbm_to_vmem [thread:$0]  %s0, 128, %s20, [#allocation4]
    $region5: #{tpu_custom_call.1} parent=1 // pred_fallthru
      _
    // Predicated region
    $region6: #{tpu_custom_call.1} parent=1 // pred_check
      _
    $region7: #{tpu_custom_call.1} parent=1 // pred_check_branch
      %24 = sbr.rel (0) target = $region9
    $region8: #{tpu_custom_call.1} parent=1 // pred_region
      %s26 = ssub.s32 128, 128
      %27 = vsyncadd [#allocation7], %s26
      %s29 = sshll.u32 [#allocation6], 4
      %s30 = int_to_ptr.vmem [resolvable:$true] %s29
      %32 = dma.hbm_to_vmem [thread:$0]  %s1, 128, %s30, [#allocation7]
    $region9: #{tpu_custom_call.1} parent=1 // pred_fallthru
      _
    // Predicated region
    $region10: #{tpu_custom_call.1} parent=1 // pred_check
      _
    $region11: #{tpu_custom_call.1} parent=1 // pred_check_branch
      %34 = sbr.rel (0) target = $region13
    $region12: #{tpu_custom_call.1} parent=1 // pred_region
      _
    $region13: #{tpu_custom_call.1} parent=1 // pred_fallthru
      _
    // Predicated region
    $region14: #{tpu_custom_call.1} parent=1 // pred_check
      _
    $region15: #{tpu_custom_call.1} parent=1 // pred_check_branch
      %36 = sbr.rel (0) target = $region17
    $region16: #{tpu_custom_call.1} parent=1 // pred_region
      _
    $region17: #{tpu_custom_call.1} parent=1 // pred_fallthru
      _
    // Predicated region
    $region18: #{tpu_custom_call.1} parent=1 // pred_check
      _
    $region19: #{tpu_custom_call.1} parent=1 // pred_check_branch
      %38 = sbr.rel (0) target = $region21
    $region20: #{tpu_custom_call.1} parent=1 // pred_region
      %39 = dma.done [#allocation4], 128
    $region21: #{tpu_custom_call.1} parent=1 // pred_fallthru
      _
    // Predicated region
    $region22: #{tpu_custom_call.1} parent=1 // pred_check
      _
    $region23: #{tpu_custom_call.1} parent=1 // pred_check_branch
      %41 = sbr.rel (0) target = $region25
    $region24: #{tpu_custom_call.1} parent=1 // pred_region
      %42 = dma.done [#allocation7], 128
    $region25: #{tpu_custom_call.1} parent=1 // pred_fallthru
      _
    %v43 = vld [vmem:[#allocation3] sm:$0xff]
    %v44 = vld [vmem:[#allocation6] sm:$0xff]
    %v45 = vld [vmem:[%s2] sm:$0x3]
    %v46 = vlaneseq
    %v47 = vshrl.u32 %v46, 7
    %v48 = vsub.s32 1, %v47
    %v49 = vrot.slane %v45, %v48
    %v50 = vmul.f32 %v49, %v44
    %v51 = vlaneseq
    %v52 = vshrl.u32 %v51, 7
    %v53 = vsub.s32 0, %v52
    %v54 = vrot.slane %v45, %v53
    %v55 = vadd.f32 %v54, %v50
    %v56 = vmul.f32 %v43, %v55
    %s57 = sld [smem:[#allocation2]]
    %v58 = vstv %s57
    %vm59 = vcmask 261120
    %v61 = vsel %vm59, 1.0, 0
    %v64 = vsel %vm59, %v56, 0
    %66 = vmatprep.subr.mxu0 0.0
    %67 = vmatpush1.xpose.msra.mxu0 0.0
    %68 = vmatprep.subr.mxu0 0.0
    %69 = vmatpush1.xpose.msra.mxu0 0.0
    %70 = vmatprep.subr.mxu0 0.0
    %71 = vmatpush1.xpose.msra.mxu0 0.0
    %72 = vmatprep.subr.mxu0 0.0
    %73 = vmatpush1.xpose.msra.mxu0 0.0
    %74 = vmatprep.subr.mxu0 0.0
    %75 = vmatpush1.xpose.msra.mxu0 0.0
    %76 = vmatprep.subr.mxu0 0.0
    %77 = vmatpush1.xpose.msra.mxu0 0.0
    %78 = vmatprep.subr.mxu0 0.0
    %79 = vmatpush1.xpose.msra.mxu0 0.0
    %80 = vmatprep.subr.mxu0 0.0
    %81 = vmatpush1.xpose.msra.mxu0 0.0
    %82 = vmatprep.subr.mxu0 0.0
    %83 = vmatpush1.xpose.msra.mxu0 0.0
    %84 = vmatprep.subr.mxu0 0.0
    %85 = vmatpush1.xpose.msra.mxu0 0.0
    %86 = vmatprep.subr.mxu0 0.0
    %87 = vmatpush1.xpose.msra.mxu0 0.0
    %88 = vmatprep.subr.mxu0 0.0
    %89 = vmatpush1.xpose.msra.mxu0 0.0
    %90 = vmatprep.subr.mxu0 0.0
    %91 = vmatpush1.xpose.msra.mxu0 0.0
    %92 = vmatprep.subr.mxu0 0.0
    %93 = vmatpush1.xpose.msra.mxu0 0.0
    %94 = vmatprep.subr.mxu0 0.0
    %95 = vmatpush1.xpose.msra.mxu0 0.0
    %96 = vmatprep.subr.mxu0 0.0
    %97 = vmatpush1.xpose.msra.mxu0 %v64
    %98 = vmatprep.subr.mxu0 0.0
    %99 = vmatpush2.xpose.msra.mxu0 0.0
    %100 = vmatprep.subr.mxu0 0.0
    %101 = vmatpush2.xpose.msra.mxu0 0.0
    %102 = vmatprep.subr.mxu0 0.0
    %103 = vmatpush2.xpose.msra.mxu0 0.0
    %104 = vmatprep.subr.mxu0 0.0
    %105 = vmatpush2.xpose.msra.mxu0 0.0
    %106 = vmatprep.subr.mxu0 0.0
    %107 = vmatpush2.xpose.msra.mxu0 0.0
    %108 = vmatprep.subr.mxu0 0.0
    %109 = vmatpush2.xpose.msra.mxu0 0.0
    %110 = vmatprep.subr.mxu0 0.0
    %111 = vmatpush2.xpose.msra.mxu0 0.0
    %112 = vmatprep.subr.mxu0 0.0
    %113 = vmatpush2.xpose.msra.mxu0 0.0
    %114 = vmatprep.subr.mxu0 0.0
    %115 = vmatpush2.xpose.msra.mxu0 0.0
    %116 = vmatprep.subr.mxu0 0.0
    %117 = vmatpush2.xpose.msra.mxu0 0.0
    %118 = vmatprep.subr.mxu0 0.0
    %119 = vmatpush2.xpose.msra.mxu0 0.0
    %120 = vmatprep.subr.mxu0 0.0
    %121 = vmatpush2.xpose.msra.mxu0 0.0
    %122 = vmatprep.subr.mxu0 0.0
    %123 = vmatpush2.xpose.msra.mxu0 0.0
    %124 = vmatprep.subr.mxu0 0.0
    %125 = vmatpush2.xpose.msra.mxu0 0.0
    %126 = vmatprep.subr.mxu0 0.0
    %127 = vmatpush2.xpose.msra.mxu0 0.0
    %128 = vmatprep.subr.mxu0 0.0
    %129 = vmatpush2.xpose.msra.mxu0 0.0
    %130 = vmatprep.mubr.f32.mxu0 0.0
    %131 = vmatmul.mubr.f32.gmra.mxu0 %v61
    %v132 = vpop.f32.mrf.mxu0
    %v133 = vadd.f32 %v58, %v132
    %v134 = vpop.f32.mrf.mxu0
    %135 = vdwg.mxu0
    %vm136 = vcmask 57344
    %137 = vst.msk [vmem:[#allocation8] sm:$0x1] %vm136, %v133
    // Predicated region
    $region26: #{tpu_custom_call.1} parent=1 // pred_check
      _
    $region27: #{tpu_custom_call.1} parent=1 // pred_check_branch
      %139 = sbr.rel (0) target = $region29
    $region28: #{tpu_custom_call.1} parent=1 // pred_region
      %s141 = ssub.s32 16, 16
      %142 = vsyncadd [#allocation5], %s141
      %s144 = sshll.u32 [#allocation8], 4
      %s145 = int_to_ptr.vmem [resolvable:$true] %s144
      %147 = dma.vmem_to_hbm [thread:$0]  %s145, 16, %s4, [#allocation5]
    $region29: #{tpu_custom_call.1} parent=1 // pred_fallthru
      _
    // Predicated region
    $region30: #{tpu_custom_call.1} parent=1 // pred_check
      _
    $region31: #{tpu_custom_call.1} parent=1 // pred_check_branch
      %149 = sbr.rel (0) target = $region33
    $region32: #{tpu_custom_call.1} parent=1 // pred_region
      %150 = dma.done [#allocation5], 16
    $region33: #{tpu_custom_call.1} parent=1 // pred_fallthru
      _
    %151 = vsyncpa [#allocation4], 1
    %152 = vsyncpa [#allocation7], 1
    %153 = vsyncpa [#allocation5], 1

</llo_original>
